<compile_context>
chip_gen: v7x
topology: tpu7x:2x2x1
jax: 0.10.0
libtpu: 0.0.40
codegen_flags: <defaults>
</compile_context>

<pallas_src>
import jax
import jax.numpy as jnp
from jax.experimental import pallas as pl
from jax.experimental.pallas import tpu as pltpu

BN_EPS = 1e-5
LANE = 128
ROW_ALIGN = 16  # bf16 packs 2 rows per sublane -> weight-row slices must be 16-aligned


def _round_up(x, m):
    return ((x + m - 1) // m) * m


def _decoder_kernel(x_ref, w_ref, gamma_ref, beta_ref, o_ref):
    # x_ref:     (B, in_pad)        f32 activations (in_pad = round_up(in_channel, 16))
    # w_ref:     (L, C_pad, C_pad)  bf16 weights, pre-transposed (Cin, Cout), zero-padded
    # gamma_ref: (L, 1, C_pad)      f32 BN scale  (zero in padded lanes)
    # beta_ref:  (L, 1, C_pad)      f32 BN shift  (zero in padded lanes)
    # o_ref:     (B, C_pad)         f32, lane-dense output
    b, in_pad = x_ref.shape
    n_layers = w_ref.shape[0]
    inv_b = 1.0 / b

    h = x_ref[...]
    for layer in range(n_layers):  # static unroll: L is tiny and known at trace time
        # First layer contracts only the real input rows (x is NOT padded to C_pad).
        w = w_ref[0, :in_pad, :] if layer == 0 else w_ref[layer]
        # Linear (bias omitted: training-mode BN subtracts the batch mean, which
        # contains the bias exactly, so it cancels). bf16 x bf16 -> f32 on the MXU.
        h = jnp.dot(h.astype(jnp.bfloat16), w, preferred_element_type=jnp.float32)

        # One-pass batch statistics via cross-sublane XLU reductions (the MXU is idle
        # here, and the two sums can overlap). E[h^2] - E[h]^2 is clamped at 0; fine
        # at these activation scales.
        s1 = jnp.sum(h, axis=0, keepdims=True)        # (1, C_pad)
        s2 = jnp.sum(h * h, axis=0, keepdims=True)    # (1, C_pad)
        mean = s1 * inv_b
        var = jnp.maximum(s2 * inv_b - mean * mean, 0.0)  # biased variance

        # BN normalize + affine folded into one FMA, then ReLU (all f32 elementwise).
        scale = jax.lax.rsqrt(var + BN_EPS) * gamma_ref[layer]
        shift = beta_ref[layer] - mean * scale
        h = jnp.maximum(h * scale + shift, 0.0)

    o_ref[...] = h


def _forward(x, ws, gammas, betas, in_pad, out_channel):
    b = x.shape[0]
    c_pad = ws.shape[-1]
    x = x.astype(jnp.float32)
    if x.shape[1] != in_pad:  # tiny pad (<=15 lanes), fused under jit
        x = jnp.pad(x, ((0, 0), (0, in_pad - x.shape[1])))

    vmem = pl.BlockSpec(memory_space=pltpu.MemorySpace.VMEM)
    # Whole problem is a few tens of KiB: full-array VMEM blocks, no grid needed.
    out_pad = pl.pallas_call(
        _decoder_kernel,
        out_shape=jax.ShapeDtypeStruct((b, c_pad), jnp.float32),
        in_specs=[vmem, vmem, vmem, vmem],
        out_specs=vmem,
    )(x, ws, gammas, betas)
    return out_pad[:, :out_channel]


_forward_jit = jax.jit(_forward, static_argnums=(4, 5))


class PointNetDecoderPallas:
    """Mirror of PosePN PointNetDecoder: [Linear -> BatchNorm1d -> ReLU] * len(mlp)."""

    def __init__(self, in_channel, mlp, key):
        self.in_channel = in_channel
        self.out_channel = mlp[-1]
        # Input rows padded to a 16 multiple (bf16 sublane packing); feature lanes to 128.
        self.in_pad = _round_up(in_channel, ROW_ALIGN)
        self.c_pad = _round_up(max(self.in_pad, *mlp), LANE)

        ws, gammas, betas = [], [], []
        last = in_channel
        for out_channel in mlp:
            key, kw, kb, kg, kbeta = jax.random.split(key, 5)
            bound = 1.0 / (last ** 0.5)
            # nn.Linear weight: (out, in); stored transposed + padded (c_pad, c_pad).
            w = jax.random.uniform(kw, (out_channel, last), jnp.float32,
                                   minval=-bound, maxval=bound)
            # nn.Linear bias exists in the reference module, but training-mode BN
            # cancels it exactly (batch-mean subtraction) -> not passed to the kernel.
            _b_unused = jax.random.uniform(kb, (out_channel,), jnp.float32,
                                           minval=-bound, maxval=bound)
            # PyTorch default BN init is gamma=1, beta=0; small noise added to
            # exercise the affine path.
            gamma = 1.0 + 0.1 * jax.random.normal(kg, (out_channel,), jnp.float32)
            beta = 0.1 * jax.random.normal(kbeta, (out_channel,), jnp.float32)

            w_pad = jnp.zeros((self.c_pad, self.c_pad), jnp.float32)
            w_pad = w_pad.at[:last, :out_channel].set(w.T)
            g_pad = jnp.zeros((1, self.c_pad), jnp.float32).at[:, :out_channel].set(gamma)
            be_pad = jnp.zeros((1, self.c_pad), jnp.float32).at[:, :out_channel].set(beta)

            ws.append(w_pad.astype(jnp.bfloat16))  # bf16: native MXU input width
            gammas.append(g_pad)
            betas.append(be_pad)
            last = out_channel

        self.ws = jnp.stack(ws)          # (L, c_pad, c_pad) bf16
        self.gammas = jnp.stack(gammas)  # (L, 1, c_pad)     f32
        self.betas = jnp.stack(betas)    # (L, 1, c_pad)     f32

    def __call__(self, x):
        # Training-mode BatchNorm1d requires more than one sample (as in PyTorch).
        assert x.shape[0] > 1, "BatchNorm1d in training mode needs batch size > 1"
        return _forward_jit(x, self.ws, self.gammas, self.betas,
                            self.in_pad, self.out_channel)


if __name__ == "__main__":
    key = jax.random.PRNGKey(0)
    key, kx, kp = jax.random.split(key, 3)

    batch = 8          # NOTE: real PointNet workloads should feed many more rows
    in_channel = 32    # (MXU utilization scales ~linearly with rows up to 128/256).
    mlp = (64, 32)

    x = jax.random.normal(kx, (batch, in_channel), jnp.float32)

    model = PointNetDecoderPallas(in_channel, mlp, kp)
    out = jax.block_until_ready(model(x))

    assert out.shape == (batch, mlp[-1])
    assert bool(jnp.all(out >= 0.0))        # ReLU output is non-negative
    assert bool(jnp.all(jnp.isfinite(out)))
    print("KERNEL_OK")
</pallas_src>

<mosaic_0001>
module attributes {stable_mosaic.version = 11 : i64} {
  func.func @_decoder_kernel(%arg0: memref<8x32xf32, #tpu.memory_space<vmem>>, %arg1: memref<2x128x128xbf16, #tpu.memory_space<vmem>>, %arg2: memref<2x1x128xf32, #tpu.memory_space<vmem>>, %arg3: memref<2x1x128xf32, #tpu.memory_space<vmem>>, %arg4: memref<8x128xf32, #tpu.memory_space<vmem>>) attributes {dimension_semantics = [], scalar_prefetch = 0 : i64, scratch_operands = 0 : i64, tpu.core_type = #tpu.core_type<tc>} {
    %c0 = arith.constant 0 : index
    %c0_0 = arith.constant 0 : index
    %0 = vector.load %arg0[%c0, %c0_0] : memref<8x32xf32, #tpu.memory_space<vmem>>, vector<8x32xf32>
    %c0_1 = arith.constant 0 : index
    %c0_2 = arith.constant 0 : index
    %c0_3 = arith.constant 0 : index
    %1 = vector.load %arg1[%c0_1, %c0_2, %c0_3] : memref<2x128x128xbf16, #tpu.memory_space<vmem>>, vector<1x32x128xbf16>
    %2 = vector.shape_cast %1 : vector<1x32x128xbf16> to vector<32x128xbf16>
    %3 = arith.truncf %0 : vector<8x32xf32> to vector<8x32xbf16>
    %cst = arith.constant dense<0.000000e+00> : vector<8x128xf32>
    %4 = tpu.matmul %3, %2, %cst {dimension_numbers = #tpu.dot_dimension_numbers<[1], [0], [0], [1], [0, 0, 1, 1], [], []>} : vector<8x32xbf16>, vector<32x128xbf16>, vector<8x128xf32> -> vector<8x128xf32>
    %cst_4 = arith.constant dense<0.000000e+00> : vector<128xf32>
    %5 = vector.multi_reduction <add>, %4, %cst_4 [0] : vector<8x128xf32> to vector<128xf32>
    %6 = vector.shape_cast %5 : vector<128xf32> to vector<1x128xf32>
    %7 = arith.mulf %4, %4 : vector<8x128xf32>
    %cst_5 = arith.constant dense<0.000000e+00> : vector<128xf32>
    %8 = vector.multi_reduction <add>, %7, %cst_5 [0] : vector<8x128xf32> to vector<128xf32>
    %9 = vector.shape_cast %8 : vector<128xf32> to vector<1x128xf32>
    %cst_6 = arith.constant 1.250000e-01 : f32
    %10 = vector.broadcast %cst_6 : f32 to vector<1x128xf32>
    %11 = arith.mulf %6, %10 : vector<1x128xf32>
    %cst_7 = arith.constant 1.250000e-01 : f32
    %12 = vector.broadcast %cst_7 : f32 to vector<1x128xf32>
    %13 = arith.mulf %9, %12 : vector<1x128xf32>
    %14 = arith.mulf %11, %11 : vector<1x128xf32>
    %15 = arith.subf %13, %14 : vector<1x128xf32>
    %cst_8 = arith.constant 0.000000e+00 : f32
    %16 = vector.broadcast %cst_8 : f32 to vector<1x128xf32>
    %17 = arith.maximumf %15, %16 : vector<1x128xf32>
    %cst_9 = arith.constant 9.99999974E-6 : f32
    %18 = vector.broadcast %cst_9 : f32 to vector<1x128xf32>
    %19 = arith.addf %17, %18 : vector<1x128xf32>
    %20 = math.rsqrt %19 : vector<1x128xf32>
    %c0_10 = arith.constant 0 : index
    %c0_11 = arith.constant 0 : index
    %c0_12 = arith.constant 0 : index
    %21 = vector.load %arg2[%c0_10, %c0_11, %c0_12] : memref<2x1x128xf32, #tpu.memory_space<vmem>>, vector<1x1x128xf32>
    %22 = vector.shape_cast %21 : vector<1x1x128xf32> to vector<1x128xf32>
    %23 = arith.mulf %20, %22 : vector<1x128xf32>
    %c0_13 = arith.constant 0 : index
    %c0_14 = arith.constant 0 : index
    %c0_15 = arith.constant 0 : index
    %24 = vector.load %arg3[%c0_13, %c0_14, %c0_15] : memref<2x1x128xf32, #tpu.memory_space<vmem>>, vector<1x1x128xf32>
    %25 = vector.shape_cast %24 : vector<1x1x128xf32> to vector<1x128xf32>
    %26 = arith.mulf %11, %23 : vector<1x128xf32>
    %27 = arith.subf %25, %26 : vector<1x128xf32>
    %28 = vector.broadcast %23 : vector<1x128xf32> to vector<8x128xf32>
    %29 = arith.mulf %4, %28 : vector<8x128xf32>
    %30 = vector.broadcast %27 : vector<1x128xf32> to vector<8x128xf32>
    %31 = arith.addf %29, %30 : vector<8x128xf32>
    %cst_16 = arith.constant 0.000000e+00 : f32
    %32 = vector.broadcast %cst_16 : f32 to vector<8x128xf32>
    %33 = arith.maximumf %31, %32 : vector<8x128xf32>
    %c1 = arith.constant 1 : index
    %c0_17 = arith.constant 0 : index
    %c0_18 = arith.constant 0 : index
    %34 = vector.load %arg1[%c1, %c0_17, %c0_18] : memref<2x128x128xbf16, #tpu.memory_space<vmem>>, vector<1x128x128xbf16>
    %35 = vector.shape_cast %34 : vector<1x128x128xbf16> to vector<128x128xbf16>
    %36 = arith.truncf %33 : vector<8x128xf32> to vector<8x128xbf16>
    %cst_19 = arith.constant dense<0.000000e+00> : vector<8x128xf32>
    %37 = tpu.matmul %36, %35, %cst_19 {dimension_numbers = #tpu.dot_dimension_numbers<[1], [0], [0], [1], [0, 0, 1, 1], [], []>} : vector<8x128xbf16>, vector<128x128xbf16>, vector<8x128xf32> -> vector<8x128xf32>
    %cst_20 = arith.constant dense<0.000000e+00> : vector<128xf32>
    %38 = vector.multi_reduction <add>, %37, %cst_20 [0] : vector<8x128xf32> to vector<128xf32>
    %39 = vector.shape_cast %38 : vector<128xf32> to vector<1x128xf32>
    %40 = arith.mulf %37, %37 : vector<8x128xf32>
    %cst_21 = arith.constant dense<0.000000e+00> : vector<128xf32>
    %41 = vector.multi_reduction <add>, %40, %cst_21 [0] : vector<8x128xf32> to vector<128xf32>
    %42 = vector.shape_cast %41 : vector<128xf32> to vector<1x128xf32>
    %cst_22 = arith.constant 1.250000e-01 : f32
    %43 = vector.broadcast %cst_22 : f32 to vector<1x128xf32>
    %44 = arith.mulf %39, %43 : vector<1x128xf32>
    %cst_23 = arith.constant 1.250000e-01 : f32
    %45 = vector.broadcast %cst_23 : f32 to vector<1x128xf32>
    %46 = arith.mulf %42, %45 : vector<1x128xf32>
    %47 = arith.mulf %44, %44 : vector<1x128xf32>
    %48 = arith.subf %46, %47 : vector<1x128xf32>
    %cst_24 = arith.constant 0.000000e+00 : f32
    %49 = vector.broadcast %cst_24 : f32 to vector<1x128xf32>
    %50 = arith.maximumf %48, %49 : vector<1x128xf32>
    %cst_25 = arith.constant 9.99999974E-6 : f32
    %51 = vector.broadcast %cst_25 : f32 to vector<1x128xf32>
    %52 = arith.addf %50, %51 : vector<1x128xf32>
    %53 = math.rsqrt %52 : vector<1x128xf32>
    %c1_26 = arith.constant 1 : index
    %c0_27 = arith.constant 0 : index
    %c0_28 = arith.constant 0 : index
    %54 = vector.load %arg2[%c1_26, %c0_27, %c0_28] : memref<2x1x128xf32, #tpu.memory_space<vmem>>, vector<1x1x128xf32>
    %55 = vector.shape_cast %54 : vector<1x1x128xf32> to vector<1x128xf32>
    %56 = arith.mulf %53, %55 : vector<1x128xf32>
    %c1_29 = arith.constant 1 : index
    %c0_30 = arith.constant 0 : index
    %c0_31 = arith.constant 0 : index
    %57 = vector.load %arg3[%c1_29, %c0_30, %c0_31] : memref<2x1x128xf32, #tpu.memory_space<vmem>>, vector<1x1x128xf32>
    %58 = vector.shape_cast %57 : vector<1x1x128xf32> to vector<1x128xf32>
    %59 = arith.mulf %44, %56 : vector<1x128xf32>
    %60 = arith.subf %58, %59 : vector<1x128xf32>
    %61 = vector.broadcast %56 : vector<1x128xf32> to vector<8x128xf32>
    %62 = arith.mulf %37, %61 : vector<8x128xf32>
    %63 = vector.broadcast %60 : vector<1x128xf32> to vector<8x128xf32>
    %64 = arith.addf %62, %63 : vector<8x128xf32>
    %cst_32 = arith.constant 0.000000e+00 : f32
    %65 = vector.broadcast %cst_32 : f32 to vector<8x128xf32>
    %66 = arith.maximumf %64, %65 : vector<8x128xf32>
    %c0_33 = arith.constant 0 : index
    %c0_34 = arith.constant 0 : index
    %67 = vector.load %arg4[%c0_33, %c0_34] : memref<8x128xf32, #tpu.memory_space<vmem>>, vector<8x128xf32>
    tpu.vector_store %arg4[%c0_33, %c0_34], %66 {strides = array<i32>} : memref<8x128xf32, #tpu.memory_space<vmem>>, vector<8x128xf32>,
    return
  }
}

</mosaic_0001>

<llo_original>
// kernel: _forward.1
$region0: #{_forward.1}
  #allocation0 [shape = 'u32[]', space=smem, size = 0x4, offset = 0x4, fixed_abs, tag = 'smem constant byte address 0x4 - core index']
  #allocation1 [shape = 'u32[144,128]{1,0:T(1,128)}', space=vmem, size = 0x12000, scoped, tag = 'internal scratch']
  %s0 = inlined_call_operand.hbm [shape: f32[8,32], index: 0, kind: input, shape index: {}]
  %s1 = inlined_call_operand.hbm [shape: bf16[2,128,128], index: 1, kind: input, shape index: {}]
  %s2 = inlined_call_operand.vmem [shape: f32[2,1,128], index: 2, kind: input, shape index: {}]
  %s3 = inlined_call_operand.vmem [shape: f32[2,1,128], index: 3, kind: input, shape index: {}]
  %s4 = inlined_call_operand.hbm [shape: f32[8,128], index: 4, kind: output, shape index: {}]
  %s5 = sld [smem:[#allocation0]]
  $region34: #{_forward.1} parent=0
    _
  %s7 = ssub.s32 1, %s5
  %s8 = scalar_select 0, %s7, %s5
  $region1: #{_forward.1} parent=0
    #allocation2 [shape = 'u8[4096]{0}', space=vmem, size = 0x1000, scoped, tag = 'input window, operand 0, single buffered']
    #allocation3 [shape = 's32[1]{0}', space=sflag, size = 0x4, scoped, tag = 'scoped memory for _forward.1']
    #allocation4 [shape = 's32[1]{0}', space=sflag, size = 0x4, scoped, tag = 'scoped memory for _forward.1']
    #allocation5 [shape = 'u8[65536]{0}', space=vmem, size = 0x10000, scoped, tag = 'input window, operand 1, single buffered']
    #allocation6 [shape = 's32[1]{0}', space=sflag, size = 0x4, scoped, tag = 'scoped memory for _forward.1']
    #allocation7 [shape = 'u8[4096]{0}', space=vmem, size = 0x1000, scoped, tag = 'output window, operand 0, single buffered']
    %9 = vsyncpa [#allocation3], 0
    %10 = vsyncpa [#allocation6], 0
    %11 = vsyncpa [#allocation4], 0
    // Predicated region
    $region2: #{_forward.1} parent=1 // pred_check
      _
    $region3: #{_forward.1} parent=1 // pred_check_branch
      %13 = sbr.rel (0) target = $region5
    $region4: #{_forward.1} parent=1 // pred_region
      %s15 = ssub.s32 128, 128
      %16 = vsyncadd [#allocation3], %s15
      %s18 = sshll.u32 [#allocation2], 4
      %s19 = int_to_ptr.vmem [resolvable:$true] %s18
      %21 = dma.hbm_to_vmem [thread:$0]  %s0, 128, %s19, [#allocation3]
    $region5: #{_forward.1} parent=1 // pred_fallthru
      _
    // Predicated region
    $region6: #{_forward.1} parent=1 // pred_check
      _
    $region7: #{_forward.1} parent=1 // pred_check_branch
      %23 = sbr.rel (0) target = $region9
    $region8: #{_forward.1} parent=1 // pred_region
      %s25 = ssub.s32 2048, 2048
      %26 = vsyncadd [#allocation6], %s25
      %s27 = sshll.u32 [#allocation5], 4
      %s28 = int_to_ptr.vmem [resolvable:$true] %s27
      %33 = dma.hbm_to_vmem [thread:$0]  %s1, 2048, %s28, [#allocation6], 64, 64, 4
    $region9: #{_forward.1} parent=1 // pred_fallthru
      _
    // Predicated region
    $region10: #{_forward.1} parent=1 // pred_check
      _
    $region11: #{_forward.1} parent=1 // pred_check_branch
      %35 = sbr.rel (0) target = $region13
    $region12: #{_forward.1} parent=1 // pred_region
      _
    $region13: #{_forward.1} parent=1 // pred_fallthru
      _
    // Predicated region
    $region14: #{_forward.1} parent=1 // pred_check
      _
    $region15: #{_forward.1} parent=1 // pred_check_branch
      %37 = sbr.rel (0) target = $region17
    $region16: #{_forward.1} parent=1 // pred_region
      _
    $region17: #{_forward.1} parent=1 // pred_fallthru
      _
    // Predicated region
    $region18: #{_forward.1} parent=1 // pred_check
      _
    $region19: #{_forward.1} parent=1 // pred_check_branch
      %39 = sbr.rel (0) target = $region21
    $region20: #{_forward.1} parent=1 // pred_region
      %40 = dma.done [#allocation3], 128
    $region21: #{_forward.1} parent=1 // pred_fallthru
      _
    // Predicated region
    $region22: #{_forward.1} parent=1 // pred_check
      _
    $region23: #{_forward.1} parent=1 // pred_check_branch
      %42 = sbr.rel (0) target = $region25
    $region24: #{_forward.1} parent=1 // pred_region
      %43 = dma.done [#allocation6], 2048
    $region25: #{_forward.1} parent=1 // pred_fallthru
      _
    %v45 = vld [vmem:[#allocation2] sm:$0xff]
    %v46 = vld [vmem:[#allocation5] sm:$0xf]
    %v47 = vld [vmem:[#allocation5 + $0x4] sm:$0xf]
    %v48 = vld [vmem:[#allocation5 + $0x8] sm:$0xf]
    %v49 = vld [vmem:[#allocation5 + $0xc] sm:$0xf]
    %v50 = vpack.c.bf16 %v45, %v45
    %v55 = vunpack.c.l.b16 %v46
    %v56 = vunpack.c.l.b16 %v47
    %v57 = vunpack.c.l.b16 %v48
    %v58 = vunpack.c.l.b16 %v49
    %v59 = vpack.c.b16 %v56, %v55
    %v60 = vpack.c.b16 %v58, %v57
    %vm63 = vcmask 261120
    %v65 = vsel %vm63, %v50, 0
    %67 = vmatprep.subr.bf16.mxu0 0
    %68 = vmatpush1.bf16.msra.mxu0 %v59
    %69 = vmatprep.subr.bf16.mxu0 0
    %70 = vmatpush1.bf16.msra.mxu0 %v60
    %71 = vmatprep.subr.bf16.mxu0 0
    %72 = vmatpush1.bf16.msra.mxu0 0
    %73 = vmatprep.subr.bf16.mxu0 0
    %74 = vmatpush1.bf16.msra.mxu0 0
    %75 = vmatprep.subr.bf16.mxu0 0
    %76 = vmatpush1.bf16.msra.mxu0 0
    %77 = vmatprep.subr.bf16.mxu0 0
    %78 = vmatpush1.bf16.msra.mxu0 0
    %79 = vmatprep.subr.bf16.mxu0 0
    %80 = vmatpush1.bf16.msra.mxu0 0
    %81 = vmatprep.subr.bf16.mxu0 0
    %82 = vmatpush1.bf16.msra.mxu0 0
    %83 = vmatprep.subr.bf16.mxu0 0
    %84 = vmatpush1.bf16.msra.mxu0 0
    %85 = vmatprep.subr.bf16.mxu0 0
    %86 = vmatpush1.bf16.msra.mxu0 0
    %87 = vmatprep.subr.bf16.mxu0 0
    %88 = vmatpush1.bf16.msra.mxu0 0
    %89 = vmatprep.subr.bf16.mxu0 0
    %90 = vmatpush1.bf16.msra.mxu0 0
    %91 = vmatprep.subr.bf16.mxu0 0
    %92 = vmatpush1.bf16.msra.mxu0 0
    %93 = vmatprep.subr.bf16.mxu0 0
    %94 = vmatpush1.bf16.msra.mxu0 0
    %95 = vmatprep.subr.bf16.mxu0 0
    %96 = vmatpush1.bf16.msra.mxu0 0
    %97 = vmatprep.subr.bf16.mxu0 0
    %98 = vmatpush1.bf16.msra.mxu0 0
    %99 = vmatprep.mubr.bf16.mxu0 0
    %100 = vmatmul.mubr.bf16.gmra.mrb[0].mxu0 %v65
    %v101 = vpop.f32.mrb[0].mxu0
    %v102 = vadd.f32 0.0, %v101
    %v103 = vpop.f32.mrb[0].mxu0
    %v104 = vpop.f32.mrb[0].mxu0
    %v105 = vpop.f32.mrb[0].mxu0
    %106 = vdwg.mxu0
    %v107 = vrot.slane %v102, 4
    %v108 = vadd.f32 %v102, %v107
    %v109 = vrot.slane %v108, 2
    %v110 = vadd.f32 %v108, %v109
    %v111 = vrot.slane %v110, 1
    %v112 = vadd.f32 %v110, %v111
    %v113 = vmul.f32 %v102, %v102
    %v114 = vrot.slane %v113, 4
    %v115 = vadd.f32 %v113, %v114
    %v116 = vrot.slane %v115, 2
    %v117 = vadd.f32 %v115, %v116
    %v118 = vrot.slane %v117, 1
    %v119 = vadd.f32 %v117, %v118
    %v120 = vmul.f32 %v112, 0.125
    %v121 = vmul.f32 %v119, 0.125
    %v122 = vmul.f32 %v120, %v120
    %v123 = vsub.f32 %v121, %v122
    %v124 = vmax.f32 %v123, 0.0
    %v125 = vadd.f32 %v124, 1e-05
    %v126 = vrsqrt.pop %v125
    %v127 = vld [vmem:[%s2] sm:$0x1]
    %v128 = vmul.f32 %v126, %v127
    %v129 = vld [vmem:[%s3] sm:$0x1]
    %v130 = vmul.f32 %v120, %v128
    %v131 = vsub.f32 %v129, %v130
    %v132 = vlaneseq
    %v133 = vshrl.u32 %v132, 7
    %v134 = vsub.s32 0, %v133
    %v135 = vrot.slane %v128, %v134
    %v136 = vmul.f32 %v102, %v135
    %v138 = vlaneseq
    %v139 = vshrl.u32 %v138, 7
    %v140 = vsub.s32 0, %v139
    %v141 = vrot.slane %v131, %v140
    %v143 = vadd.f32 %v136, %v141
    %v144 = vmax.f32 %v143, 0.0
    %s145 = scalar_lea.vmem [#allocation5], 64
    %v146 = vld [vmem:[%s145] sm:$0xf]
    %v147 = vld [vmem:[%s145 + $0x4] sm:$0xf]
    %v148 = vld [vmem:[%s145 + $0x8] sm:$0xf]
    %v149 = vld [vmem:[%s145 + $0xc] sm:$0xf]
    %v150 = vld [vmem:[%s145 + $0x10] sm:$0xf]
    %v151 = vld [vmem:[%s145 + $0x14] sm:$0xf]
    %v152 = vld [vmem:[%s145 + $0x18] sm:$0xf]
    %v153 = vld [vmem:[%s145 + $0x1c] sm:$0xf]
    %v154 = vld [vmem:[%s145 + $0x20] sm:$0xf]
    %v155 = vld [vmem:[%s145 + $0x24] sm:$0xf]
    %v156 = vld [vmem:[%s145 + $0x28] sm:$0xf]
    %v157 = vld [vmem:[%s145 + $0x2c] sm:$0xf]
    %v158 = vld [vmem:[%s145 + $0x30] sm:$0xf]
    %v159 = vld [vmem:[%s145 + $0x34] sm:$0xf]
    %v160 = vld [vmem:[%s145 + $0x38] sm:$0xf]
    %v161 = vld [vmem:[%s145 + $0x3c] sm:$0xf]
    %v162 = vpack.c.bf16 %v144, %v144
    %v179 = vunpack.c.l.b16 %v146
    %v180 = vunpack.c.l.b16 %v147
    %v181 = vunpack.c.l.b16 %v148
    %v182 = vunpack.c.l.b16 %v149
    %v183 = vunpack.c.l.b16 %v150
    %v184 = vunpack.c.l.b16 %v151
    %v185 = vunpack.c.l.b16 %v152
    %v186 = vunpack.c.l.b16 %v153
    %v187 = vunpack.c.l.b16 %v154
    %v188 = vunpack.c.l.b16 %v155
    %v189 = vunpack.c.l.b16 %v156
    %v190 = vunpack.c.l.b16 %v157
    %v191 = vunpack.c.l.b16 %v158
    %v192 = vunpack.c.l.b16 %v159
    %v193 = vunpack.c.l.b16 %v160
    %v194 = vunpack.c.l.b16 %v161
    %v195 = vpack.c.b16 %v180, %v179
    %v196 = vpack.c.b16 %v182, %v181
    %v197 = vpack.c.b16 %v184, %v183
    %v198 = vpack.c.b16 %v186, %v185
    %v199 = vpack.c.b16 %v188, %v187
    %v200 = vpack.c.b16 %v190, %v189
    %v201 = vpack.c.b16 %v192, %v191
    %v202 = vpack.c.b16 %v194, %v193
    %211 = vmatprep.subr.bf16.mxu0 0
    %212 = vmatpush1.bf16.msra.mxu0 %v195
    %213 = vmatprep.subr.bf16.mxu0 0
    %214 = vmatpush1.bf16.msra.mxu0 %v196
    %215 = vmatprep.subr.bf16.mxu0 0
    %216 = vmatpush1.bf16.msra.mxu0 %v197
    %217 = vmatprep.subr.bf16.mxu0 0
    %218 = vmatpush1.bf16.msra.mxu0 %v198
    %219 = vmatprep.subr.bf16.mxu0 0
    %220 = vmatpush1.bf16.msra.mxu0 %v199
    %221 = vmatprep.subr.bf16.mxu0 0
    %222 = vmatpush1.bf16.msra.mxu0 %v200
    %223 = vmatprep.subr.bf16.mxu0 0
    %224 = vmatpush1.bf16.msra.mxu0 %v201
    %225 = vmatprep.subr.bf16.mxu0 0
    %226 = vmatpush1.bf16.msra.mxu0 %v202
    %227 = vmatprep.subr.bf16.mxu0 0
    %228 = vmatpush1.bf16.msra.mxu0 0
    %229 = vmatprep.subr.bf16.mxu0 0
    %230 = vmatpush1.bf16.msra.mxu0 0
    %231 = vmatprep.subr.bf16.mxu0 0
    %232 = vmatpush1.bf16.msra.mxu0 0
    %233 = vmatprep.subr.bf16.mxu0 0
    %234 = vmatpush1.bf16.msra.mxu0 0
    %235 = vmatprep.subr.bf16.mxu0 0
    %236 = vmatpush1.bf16.msra.mxu0 0
    %237 = vmatprep.subr.bf16.mxu0 0
    %238 = vmatpush1.bf16.msra.mxu0 0
    %239 = vmatprep.subr.bf16.mxu0 0
    %240 = vmatpush1.bf16.msra.mxu0 0
    %241 = vmatprep.subr.bf16.mxu0 0
    %242 = vmatpush1.bf16.msra.mxu0 0
    %243 = vmatprep.mubr.bf16.mxu0 0
    %244 = vmatmul.mubr.bf16.gmra.mrb[0].mxu0 %v162
    %v245 = vpop.f32.mrb[0].mxu0
    %v246 = vadd.f32 0.0, %v245
    %v247 = vpop.f32.mrb[0].mxu0
    %v248 = vpop.f32.mrb[0].mxu0
    %v249 = vpop.f32.mrb[0].mxu0
    %250 = vdwg.mxu0
    %v251 = vrot.slane %v246, 4
    %v252 = vadd.f32 %v246, %v251
    %v253 = vrot.slane %v252, 2
    %v254 = vadd.f32 %v252, %v253
    %v255 = vrot.slane %v254, 1
    %v256 = vadd.f32 %v254, %v255
    %v257 = vmul.f32 %v246, %v246
    %v258 = vrot.slane %v257, 4
    %v259 = vadd.f32 %v257, %v258
    %v260 = vrot.slane %v259, 2
    %v261 = vadd.f32 %v259, %v260
    %v262 = vrot.slane %v261, 1
    %v263 = vadd.f32 %v261, %v262
    %v264 = vmul.f32 %v256, 0.125
    %v265 = vmul.f32 %v263, 0.125
    %v266 = vmul.f32 %v264, %v264
    %v267 = vsub.f32 %v265, %v266
    %v268 = vmax.f32 %v267, 0.0
    %v269 = vadd.f32 %v268, 1e-05
    %v270 = vrsqrt.pop %v269
    %s271 = scalar_lea.vmem %s2, 1
    %v272 = vld [vmem:[%s271] sm:$0x1]
    %v273 = vmul.f32 %v270, %v272
    %s274 = scalar_lea.vmem %s3, 1
    %v275 = vld [vmem:[%s274] sm:$0x1]
    %v276 = vmul.f32 %v264, %v273
    %v277 = vsub.f32 %v275, %v276
    %v278 = vlaneseq
    %v279 = vshrl.u32 %v278, 7
    %v280 = vsub.s32 0, %v279
    %v281 = vrot.slane %v273, %v280
    %v282 = vmul.f32 %v246, %v281
    %v284 = vlaneseq
    %v285 = vshrl.u32 %v284, 7
    %v286 = vsub.s32 0, %v285
    %v287 = vrot.slane %v277, %v286
    %v289 = vadd.f32 %v282, %v287
    %v290 = vmax.f32 %v289, 0.0
    %291 = vst [vmem:[#allocation7] sm:$0xff] %v290
    // Predicated region
    $region26: #{_forward.1} parent=1 // pred_check
      _
    $region27: #{_forward.1} parent=1 // pred_check_branch
      %293 = sbr.rel (0) target = $region29
    $region28: #{_forward.1} parent=1 // pred_region
      %s295 = ssub.s32 128, 128
      %296 = vsyncadd [#allocation4], %s295
      %s298 = sshll.u32 [#allocation7], 4
      %s299 = int_to_ptr.vmem [resolvable:$true] %s298
      %301 = dma.vmem_to_hbm [thread:$0]  %s299, 128, %s4, [#allocation4]
    $region29: #{_forward.1} parent=1 // pred_fallthru
      _
    // Predicated region
    $region30: #{_forward.1} parent=1 // pred_check
      _
    $region31: #{_forward.1} parent=1 // pred_check_branch
      %303 = sbr.rel (0) target = $region33
    $region32: #{_forward.1} parent=1 // pred_region
      %304 = dma.done [#allocation4], 128
    $region33: #{_forward.1} parent=1 // pred_fallthru
      _
    %305 = vsyncpa [#allocation3], 1
    %306 = vsyncpa [#allocation6], 1
    %307 = vsyncpa [#allocation4], 1

</llo_original>
